<compile_context>
chip_gen: v6e
topology: v6e:2x2x1
jax: 0.10.0
libtpu: 0.0.40
codegen_flags: <defaults>
</compile_context>

<pallas_src>
from functools import partial

import jax
import jax.numpy as jnp
from jax.experimental import pallas as pl
from jax.experimental.pallas import tpu as pltpu


def _make_divisible(v, divisor=8, min_value=None):
    if min_value is None:
        min_value = divisor
    new_v = max(min_value, int(v + divisor / 2) // divisor * divisor)
    if new_v < 0.9 * v:
        new_v += divisor
    return new_v


# ---------------------------------------------------------------------------
# Device-aware sizing helpers.
# ---------------------------------------------------------------------------

def _tpu_vmem_capacity_bytes():
    """Physical VMEM per core; conservative (v7x-sized) default on failure."""
    try:
        cap = int(getattr(pltpu.get_tpu_info(), "vmem_capacity_bytes", 0) or 0)
        if cap > 0:
            return cap
    except Exception:
        pass
    return 64 << 20


def _num_tensorcores():
    """TensorCores one Pallas call can shard a 'parallel' grid axis across."""
    try:
        kind = jax.devices()[0].device_kind.lower()
    except Exception:
        return 1
    # v4 / v5p megacore and v7x expose 2 TensorCores; v5e / v6e have 1.
    return 2 if any(tag in kind for tag in ("v4", "v5p", "v7")) else 1


def _device_mem_config():
    vmem_cap = _tpu_vmem_capacity_bytes()
    # ~48 MiB budget cap on v7x (64 MiB physical), ~96 MiB on v5e/v6e (128 MiB).
    budget_cap = int(min(vmem_cap * 3 // 4, 96 << 20))
    # ~4 MiB x-blocks on v7x, 8 MiB on v5e/v6e (measured >=85% of HBM roofline).
    target_bytes = int(min(8 << 20, max(1 << 20, vmem_cap // 16)))
    return budget_cap, target_bytes


def _pick_batch_block(n, per_item_bytes, target_bytes, min_grid_steps):
    """Largest divisor of n whose x-block stays under ~target_bytes.  The
    'at least min_grid_steps grid steps' halving is only applied when more than
    one TensorCore can shard the 'parallel' batch axis; on single-TC parts the
    grid is a serial loop and extra steps just add per-step overhead."""
    nb = int(max(1, min(n, target_bytes // max(per_item_bytes, 1))))
    if min_grid_steps > 1 and n >= min_grid_steps:
        nb = min(nb, max(1, n // min_grid_steps))
    while n % nb:
        nb -= 1
    return nb


def _pick_hw_block(hw, bytes_per_pos, target_bytes):
    """Largest multiple-of-128 divisor of hw whose spatial tile fits
    target_bytes (falls back to the smallest such divisor); None if hw has no
    multiple-of-128 divisor (spatial tiling then not possible)."""
    divisors = [d for d in range(128, hw + 1, 128) if hw % d == 0]
    if not divisors:
        return None
    fitting = [d for d in divisors if d * bytes_per_pos <= target_bytes]
    return max(fitting) if fitting else min(divisors)


def _weight_bytes(params_list):
    return int(sum(int(w.size) * 4 for w in params_list))


def _vmem_limit(block_bytes, weight_bytes, budget_cap):
    # double-buffered input + output slabs + params + slack
    needed = 4 * block_bytes + 4 * weight_bytes + (2 << 20)
    return int(min(max(needed, 8 << 20), budget_cap)), needed <= budget_cap


# ---------------------------------------------------------------------------
# Parameter preparation (do this once, outside the hot path).
# ---------------------------------------------------------------------------

def prepare_se_params(w1, b1, w2, b2):
    """Precompute lane-dense parameter layouts: w1t (C,Cs), w2t (Cs,C), row
    biases; and, when C divides 128, the lane-folded / lane-tiled variants used
    by the channels-last folded kernel."""
    Cs, C = w1.shape
    w1t = jnp.asarray(w1, jnp.float32).T            # (C, Cs)
    w2t = jnp.asarray(w2, jnp.float32).T            # (Cs, C)
    p = {
        "C": C,
        "Cs": Cs,
        "w1t": w1t,
        "b1": jnp.asarray(b1, jnp.float32).reshape(1, Cs),
        "w2t": w2t,
        "b2": jnp.asarray(b2, jnp.float32).reshape(1, C),
    }
    if C < 128 and 128 % C == 0:
        g = 128 // C
        # Fold the "sum the 128/C lane groups" reduction into fc1 and lane-tile
        # fc2/b2, so the folded kernel never reshapes across lanes.
        p["w1f"] = jnp.tile(w1t, (g, 1))            # (128, Cs): row l -> w1t[l % C]
        p["w2f"] = jnp.tile(w2t, (1, g))            # (Cs, 128): col l -> w2t[:, l % C]
        p["b2f"] = jnp.tile(p["b2"], (1, g))        # (1, 128)
    return p


# ---------------------------------------------------------------------------
# Kernels.
# ---------------------------------------------------------------------------

def _se_nchw_kernel(x_ref, w1t_ref, b1_ref, w2t_ref, b2_ref, o_ref):
    # x_ref / o_ref: (nb, C, HW) -- channels on sublanes, flat spatial on lanes.
    inv_hw = 1.0 / x_ref.shape[2]
    pooled = jnp.sum(x_ref[...], axis=2, dtype=jnp.float32) * inv_hw           # (nb, C)
    h = jnp.dot(pooled, w1t_ref[...], preferred_element_type=jnp.float32) + b1_ref[...]
    h = jnp.maximum(h, 0.0)                                                    # (nb, Cs)
    s = jnp.dot(h, w2t_ref[...], preferred_element_type=jnp.float32) + b2_ref[...]
    scale = jnp.clip((s + 3.0) * (1.0 / 6.0), 0.0, 1.0)                        # (nb, C)
    # Per-channel scale broadcast over the lane (spatial) axis; multiply in the
    # activation dtype (no f32 copy of x).
    o_ref[...] = x_ref[...] * scale[:, :, None].astype(o_ref.dtype)


def _se_folded_kernel(x_ref, w1f_ref, b1_ref, w2f_ref, b2f_ref, o_ref, *, inv_hw):
    # x_ref / o_ref: (nb, R, 128) where R = HW*C/128 and lane l carries channel
    # l % C.  Every vreg and every store is full-128-lane dense even though
    # C < 128.  w1f folds the per-lane-group reduction; w2f/b2f are lane-tiled.
    lane_sum = jnp.sum(x_ref[...], axis=1, dtype=jnp.float32)                  # (nb, 128)
    h = jnp.dot(lane_sum * inv_hw, w1f_ref[...],
                preferred_element_type=jnp.float32) + b1_ref[...]              # (nb, Cs)
    h = jnp.maximum(h, 0.0)
    s = jnp.dot(h, w2f_ref[...], preferred_element_type=jnp.float32) + b2f_ref[...]  # (nb, 128)
    scale = jnp.clip((s + 3.0) * (1.0 / 6.0), 0.0, 1.0).astype(o_ref.dtype)
    o_ref[...] = x_ref[...] * scale[:, None, :]


def _se_nhwc_kernel(x_ref, w1t_ref, b1_ref, w2t_ref, b2_ref, o_ref):
    # x_ref / o_ref: (nb, HW, C) -- channels on lanes.  Fallback for channel
    # counts that cannot be folded to a dense 128-lane layout (e.g. C >= 128).
    inv_hw = 1.0 / x_ref.shape[1]
    pooled = jnp.sum(x_ref[...], axis=1, dtype=jnp.float32) * inv_hw           # (nb, C)
    h = jnp.dot(pooled, w1t_ref[...], preferred_element_type=jnp.float32) + b1_ref[...]
    h = jnp.maximum(h, 0.0)
    s = jnp.dot(h, w2t_ref[...], preferred_element_type=jnp.float32) + b2_ref[...]
    scale = jnp.clip((s + 3.0) * (1.0 / 6.0), 0.0, 1.0).astype(o_ref.dtype)
    o_ref[...] = x_ref[...] * scale[:, None, :]


def _se_nchw_pool_kernel(x_ref, w1t_ref, b1_ref, w2t_ref, b2_ref, scale_ref, *, inv_hw):
    # Two-pass fallback, pass 1.  Grid: (batch, spatial tiles).  scale_ref's
    # block (1, C, 1) keeps the same index across the spatial axis, so it stays
    # resident in VMEM and doubles as the f32 pooling accumulator.
    hi = pl.program_id(1)

    @pl.when(hi == 0)
    def _init():
        scale_ref[...] = jnp.zeros_like(scale_ref)

    scale_ref[...] += jnp.sum(x_ref[...], axis=2, dtype=jnp.float32, keepdims=True)

    @pl.when(hi == pl.num_programs(1) - 1)
    def _finalize():
        pooled = scale_ref[...][:, :, 0] * inv_hw                              # (1, C)
        h = jnp.dot(pooled, w1t_ref[...], preferred_element_type=jnp.float32) + b1_ref[...]
        h = jnp.maximum(h, 0.0)
        s = jnp.dot(h, w2t_ref[...], preferred_element_type=jnp.float32) + b2_ref[...]
        scale_ref[...] = jnp.clip((s + 3.0) * (1.0 / 6.0), 0.0, 1.0)[:, :, None]


def _se_nchw_apply_kernel(scale_ref, x_ref, o_ref):
    # Two-pass fallback, pass 2.  scale_ref: (1, C, 1); x_ref/o_ref: (1, C, hb).
    o_ref[...] = x_ref[...] * scale_ref[...].astype(o_ref.dtype)


# ---------------------------------------------------------------------------
# pallas_call builders / public wrappers.
# ---------------------------------------------------------------------------

def _single_pass_call(kernel, x3, params_list, nb, vmem_bytes):
    n, d1, d2 = x3.shape
    in_specs = [pl.BlockSpec((nb, d1, d2), lambda i: (i, 0, 0))]
    in_specs += [pl.BlockSpec(w.shape, lambda i: (0, 0)) for w in params_list]
    return pl.pallas_call(
        kernel,
        out_shape=jax.ShapeDtypeStruct(x3.shape, x3.dtype),
        grid_spec=pltpu.PrefetchScalarGridSpec(
            num_scalar_prefetch=0,
            grid=(n // nb,),
            in_specs=in_specs,
            out_specs=pl.BlockSpec((nb, d1, d2), lambda i: (i, 0, 0)),
        ),
        compiler_params=pltpu.CompilerParams(
            dimension_semantics=("parallel",),
            vmem_limit_bytes=vmem_bytes),
    )(x3, *params_list)


def squeeze_excitation(x_nchw, w1, b1, w2, b2, params=None, *,
                       force_two_pass=False, hw_block=None):
    """PyTorch-layout entry point: x_nchw (N, C, H, W); fc1 weight (Cs, C),
    fc2 weight (C, Cs) (1x1 conv kernels squeezed), 1-D biases.

    Runs directly in NCHW (channels on sublanes, H*W on lanes) -- no layout
    transposes.  Falls back to a two-pass, spatially-tiled design when one
    image slab would not fit the VMEM budget (big images / N=1 on v7x) or when
    force_two_pass=True.  `hw_block` (multiple of 128 dividing H*W) optionally
    caps the spatial tile of the two-pass path."""
    n, c, h, w = x_nchw.shape
    hw = h * w
    if params is None:
        params = prepare_se_params(w1, b1, w2, b2)
    p_list = [params["w1t"], params["b1"], params["w2t"], params["b2"]]

    x3 = x_nchw.reshape(n, c, hw)                       # free: contiguous view
    itemsize = jnp.dtype(x3.dtype).itemsize
    per_image = c * hw * itemsize
    weight_bytes = _weight_bytes(p_list)
    budget_cap, target_bytes = _device_mem_config()

    nb = _pick_batch_block(n, per_image, target_bytes, _num_tensorcores())
    vmem_bytes, fits = _vmem_limit(nb * per_image, weight_bytes, budget_cap)

    use_two_pass = force_two_pass or not fits
    if use_two_pass:
        hb = hw_block if hw_block is not None else _pick_hw_block(
            hw, c * itemsize, target_bytes)
        if hb is None or hw % hb:
            use_two_pass = False                        # cannot tile spatially; best effort

    if not use_two_pass:
        out3 = _single_pass_call(_se_nchw_kernel, x3, p_list, nb, vmem_bytes)
        return out3.reshape(x_nchw.shape)

    # ---- two-pass fallback: pool + scale over spatial tiles, then apply ----
    vmem_two, _ = _vmem_limit(c * hb * itemsize, weight_bytes, budget_cap)
    grid = (n, hw // hb)

    scale = pl.pallas_call(
        partial(_se_nchw_pool_kernel, inv_hw=1.0 / hw),
        out_shape=jax.ShapeDtypeStruct((n, c, 1), jnp.float32),
        grid_spec=pltpu.PrefetchScalarGridSpec(
            num_scalar_prefetch=0,
            grid=grid,
            in_specs=[
                pl.BlockSpec((1, c, hb), lambda i, j: (i, 0, j)),
                pl.BlockSpec(params["w1t"].shape, lambda i, j: (0, 0)),
                pl.BlockSpec(params["b1"].shape, lambda i, j: (0, 0)),
                pl.BlockSpec(params["w2t"].shape, lambda i, j: (0, 0)),
                pl.BlockSpec(params["b2"].shape, lambda i, j: (0, 0)),
            ],
            out_specs=pl.BlockSpec((1, c, 1), lambda i, j: (i, 0, 0)),
        ),
        compiler_params=pltpu.CompilerParams(
            dimension_semantics=("parallel", "arbitrary"),
            vmem_limit_bytes=vmem_two),
    )(x3, *p_list)

    out3 = pl.pallas_call(
        _se_nchw_apply_kernel,
        out_shape=jax.ShapeDtypeStruct((n, c, hw), x3.dtype),
        grid_spec=pltpu.PrefetchScalarGridSpec(
            num_scalar_prefetch=0,
            grid=grid,
            in_specs=[
                pl.BlockSpec((1, c, 1), lambda i, j: (i, 0, 0)),
                pl.BlockSpec((1, c, hb), lambda i, j: (i, 0, j)),
            ],
            out_specs=pl.BlockSpec((1, c, hb), lambda i, j: (i, 0, j)),
        ),
        compiler_params=pltpu.CompilerParams(
            dimension_semantics=("parallel", "parallel"),
            vmem_limit_bytes=vmem_two),
    )(scale, x3)
    return out3.reshape(x_nchw.shape)


def squeeze_excitation_nhwc(x, w1, b1, w2, b2, params=None):
    """Channels-last entry point: x is (N, H, W, C) or (N, HW, C).  Use this
    from NHWC pipelines -- no layout transposes.  When C < 128 and divides 128
    the slab is streamed as (N, HW*C/128, 128) with lane-folded weights so all
    stores are full-lane dense."""
    orig_shape = x.shape
    if x.ndim == 4:
        n, hh, ww, c = x.shape
        hw = hh * ww
        x3 = x.reshape(n, hw, c)
    elif x.ndim == 3:
        x3 = x
        n, hw, c = x3.shape
    else:
        raise ValueError("expected (N, H, W, C) or (N, HW, C) input")
    if params is None:
        params = prepare_se_params(w1, b1, w2, b2)

    itemsize = jnp.dtype(x3.dtype).itemsize
    per_image = hw * c * itemsize
    budget_cap, target_bytes = _device_mem_config()

    if ("w1f" in params) and (hw * c) % 128 == 0:
        # Lane-dense folded layout (the common MobileNetV3 small-C case).
        p_list = [params["w1f"], params["b1"], params["w2f"], params["b2f"]]
        xk = x3.reshape(n, (hw * c) // 128, 128)        # free: contiguous view
        kernel = partial(_se_folded_kernel, inv_hw=1.0 / hw)
    else:
        p_list = [params["w1t"], params["b1"], params["w2t"], params["b2"]]
        xk = x3
        kernel = _se_nhwc_kernel

    nb = _pick_batch_block(n, per_image, target_bytes, _num_tensorcores())
    vmem_bytes, _fits = _vmem_limit(nb * per_image, _weight_bytes(p_list), budget_cap)
    # TODO(synk): add a spatially-tiled two-pass fallback (as in the NCHW path)
    # for single channels-last images that exceed the VMEM budget on v7x.

    out = _single_pass_call(kernel, xk, p_list, nb, vmem_bytes)
    return out.reshape(orig_shape)


# ---------------------------------------------------------------------------
# Reference + self-test.
# ---------------------------------------------------------------------------

def _reference(x, w1, b1, w2, b2):
    pooled = jnp.mean(x.astype(jnp.float32), axis=(2, 3), keepdims=True)       # (N,C,1,1)
    h = jnp.einsum('sc,ncij->nsij', w1.astype(jnp.float32), pooled) + b1[None, :, None, None]
    h = jnp.maximum(h, 0.0)
    s = jnp.einsum('cs,nsij->ncij', w2.astype(jnp.float32), h) + b2[None, :, None, None]
    scale = jnp.clip((s + 3.0) / 6.0, 0.0, 1.0)
    return (scale * x.astype(jnp.float32)).astype(x.dtype)


if __name__ == "__main__":
    N, C, H, W = 2, 16, 16, 16
    squeeze_factor = 4
    Cs = _make_divisible(C // squeeze_factor, 8)        # -> 8

    key = jax.random.PRNGKey(0)
    kx, k1, k2, k3, k4 = jax.random.split(key, 5)

    x = jax.random.normal(kx, (N, C, H, W), dtype=jnp.float32)
    # Conv2d 1x1 kernels squeezed to 2-D (PyTorch weight[:, :, 0, 0]) + biases.
    w1 = jax.random.normal(k1, (Cs, C), dtype=jnp.float32) * 0.1    # fc1.weight
    b1 = jax.random.normal(k2, (Cs,), dtype=jnp.float32) * 0.1      # fc1.bias
    w2 = jax.random.normal(k3, (C, Cs), dtype=jnp.float32) * 0.1    # fc2.weight
    b2 = jax.random.normal(k4, (C,), dtype=jnp.float32) * 0.1       # fc2.bias

    ref = _reference(x, w1, b1, w2, b2)
    params = prepare_se_params(w1, b1, w2, b2)          # prepared once, reused

    # 1) NCHW entry point (the PyTorch module's layout), single-pass kernel.
    out = jax.block_until_ready(
        squeeze_excitation(x, w1, b1, w2, b2, params=params))
    assert jnp.allclose(out, ref, atol=1e-5, rtol=1e-5), "NCHW single-pass mismatch"

    # 2) NCHW two-pass fallback (large-image / small-VMEM path), forced with a
    #    128-wide spatial tile so the cross-tile pooling accumulation runs.
    out2 = jax.block_until_ready(
        squeeze_excitation(x, w1, b1, w2, b2, params=params,
                           force_two_pass=True, hw_block=128))
    assert jnp.allclose(out2, ref, atol=1e-5, rtol=1e-5), "NCHW two-pass mismatch"

    # 3) Channels-last entry point exercising the lane-folded kernel
    #    (C=16 divides 128 -> (N, HW*C/128, 128) dense-lane blocks).
    x_nhwc = jnp.transpose(x, (0, 2, 3, 1))
    out3 = jax.block_until_ready(
        squeeze_excitation_nhwc(x_nhwc, w1, b1, w2, b2, params=params))
    assert jnp.allclose(jnp.transpose(out3, (0, 3, 1, 2)), ref,
                        atol=1e-5, rtol=1e-5), "NHWC folded mismatch"

    print("KERNEL_OK")
</pallas_src>

<mosaic_0001>
module attributes {stable_mosaic.version = 11 : i64} {
  func.func @_se_nchw_kernel(%arg0: i32, %arg1: memref<2x16x256xf32, #tpu.memory_space<vmem>>, %arg2: memref<16x8xf32, #tpu.memory_space<vmem>>, %arg3: memref<1x8xf32, #tpu.memory_space<vmem>>, %arg4: memref<8x16xf32, #tpu.memory_space<vmem>>, %arg5: memref<1x16xf32, #tpu.memory_space<vmem>>, %arg6: memref<2x16x256xf32, #tpu.memory_space<vmem>>) attributes {dimension_semantics = [#tpu.dimension_semantics<parallel>], iteration_bounds = array<i64: 1>, scalar_prefetch = 0 : i64, scratch_operands = 0 : i64, tpu.core_type = #tpu.core_type<tc>, window_params = [{transform_indices = @transform_0, window_bounds = array<i64: 2, 16, 256>}, {pipeline_mode = #tpu.pipeline_mode<synchronous>, transform_indices = @transform_1, window_bounds = array<i64: 16, 8>}, {pipeline_mode = #tpu.pipeline_mode<synchronous>, transform_indices = @transform_2, window_bounds = array<i64: 1, 8>}, {pipeline_mode = #tpu.pipeline_mode<synchronous>, transform_indices = @transform_3, window_bounds = array<i64: 8, 16>}, {pipeline_mode = #tpu.pipeline_mode<synchronous>, transform_indices = @transform_4, window_bounds = array<i64: 1, 16>}, {transform_indices = @transform_5, window_bounds = array<i64: 2, 16, 256>}]} {
    %c0 = arith.constant 0 : index
    %c0_0 = arith.constant 0 : index
    %c0_1 = arith.constant 0 : index
    %0 = vector.load %arg1[%c0, %c0_0, %c0_1] : memref<2x16x256xf32, #tpu.memory_space<vmem>>, vector<2x16x256xf32>
    %cst = arith.constant dense<0.000000e+00> : vector<2x16xf32>
    %1 = vector.multi_reduction <add>, %0, %cst [2] : vector<2x16x256xf32> to vector<2x16xf32>
    %cst_2 = arith.constant 3.906250e-03 : f32
    %2 = vector.broadcast %cst_2 : f32 to vector<2x16xf32>
    %3 = arith.mulf %1, %2 : vector<2x16xf32>
    %c0_3 = arith.constant 0 : index
    %c0_4 = arith.constant 0 : index
    %4 = vector.load %arg2[%c0_3, %c0_4] : memref<16x8xf32, #tpu.memory_space<vmem>>, vector<16x8xf32>
    %cst_5 = arith.constant dense<0.000000e+00> : vector<2x8xf32>
    %5 = tpu.matmul %3, %4, %cst_5 {dimension_numbers = #tpu.dot_dimension_numbers<[1], [0], [0], [1], [0, 0, 1, 1], [], []>} : vector<2x16xf32>, vector<16x8xf32>, vector<2x8xf32> -> vector<2x8xf32>
    %c0_6 = arith.constant 0 : index
    %c0_7 = arith.constant 0 : index
    %6 = vector.load %arg3[%c0_6, %c0_7] : memref<1x8xf32, #tpu.memory_space<vmem>>, vector<1x8xf32>
    %7 = vector.broadcast %6 : vector<1x8xf32> to vector<2x8xf32>
    %8 = arith.addf %5, %7 : vector<2x8xf32>
    %cst_8 = arith.constant 0.000000e+00 : f32
    %9 = vector.broadcast %cst_8 : f32 to vector<2x8xf32>
    %10 = arith.maximumf %8, %9 : vector<2x8xf32>
    %c0_9 = arith.constant 0 : index
    %c0_10 = arith.constant 0 : index
    %11 = vector.load %arg4[%c0_9, %c0_10] : memref<8x16xf32, #tpu.memory_space<vmem>>, vector<8x16xf32>
    %cst_11 = arith.constant dense<0.000000e+00> : vector<2x16xf32>
    %12 = tpu.matmul %10, %11, %cst_11 {dimension_numbers = #tpu.dot_dimension_numbers<[1], [0], [0], [1], [0, 0, 1, 1], [], []>} : vector<2x8xf32>, vector<8x16xf32>, vector<2x16xf32> -> vector<2x16xf32>
    %c0_12 = arith.constant 0 : index
    %c0_13 = arith.constant 0 : index
    %13 = vector.load %arg5[%c0_12, %c0_13] : memref<1x16xf32, #tpu.memory_space<vmem>>, vector<1x16xf32>
    %14 = vector.broadcast %13 : vector<1x16xf32> to vector<2x16xf32>
    %15 = arith.addf %12, %14 : vector<2x16xf32>
    %cst_14 = arith.constant 3.000000e+00 : f32
    %16 = vector.broadcast %cst_14 : f32 to vector<2x16xf32>
    %17 = arith.addf %15, %16 : vector<2x16xf32>
    %cst_15 = arith.constant 0.166666672 : f32
    %18 = vector.broadcast %cst_15 : f32 to vector<2x16xf32>
    %19 = arith.mulf %17, %18 : vector<2x16xf32>
    %cst_16 = arith.constant 0.000000e+00 : f32
    %cst_17 = arith.constant 1.000000e+00 : f32
    %20 = vector.broadcast %cst_16 : f32 to vector<2x16xf32>
    %21 = arith.maximumf %20, %19 : vector<2x16xf32>
    %22 = vector.broadcast %cst_17 : f32 to vector<2x16xf32>
    %23 = arith.minimumf %22, %21 : vector<2x16xf32>
    %c0_18 = arith.constant 0 : index
    %c0_19 = arith.constant 0 : index
    %c0_20 = arith.constant 0 : index
    %24 = vector.load %arg1[%c0_18, %c0_19, %c0_20] : memref<2x16x256xf32, #tpu.memory_space<vmem>>, vector<2x16x256xf32>
    %25 = vector.shape_cast %23 : vector<2x16xf32> to vector<2x16x1xf32>
    %26 = vector.broadcast %25 : vector<2x16x1xf32> to vector<2x16x256xf32>
    %27 = arith.mulf %24, %26 : vector<2x16x256xf32>
    %c0_21 = arith.constant 0 : index
    %c0_22 = arith.constant 0 : index
    %c0_23 = arith.constant 0 : index
    %28 = vector.load %arg6[%c0_21, %c0_22, %c0_23] : memref<2x16x256xf32, #tpu.memory_space<vmem>>, vector<2x16x256xf32>
    tpu.vector_store %arg6[%c0_21, %c0_22, %c0_23], %27 {strides = array<i32>} : memref<2x16x256xf32, #tpu.memory_space<vmem>>, vector<2x16x256xf32>,
    return
  }
  func.func @transform_0(%arg0: i32) -> (i32, i32, i32) {
    %c0_i32 = arith.constant 0 : i32
    %c0_i32_0 = arith.constant 0 : i32
    %c0_i32_1 = arith.constant 0 : i32
    return %arg0, %c0_i32, %c0_i32_0 : i32, i32, i32
  }
  func.func @transform_1(%arg0: i32) -> (i32, i32) {
    %c0_i32 = arith.constant 0 : i32
    %c0_i32_0 = arith.constant 0 : i32
    %c0_i32_1 = arith.constant 0 : i32
    return %c0_i32, %c0_i32_0 : i32, i32
  }
  func.func @transform_2(%arg0: i32) -> (i32, i32) {
    %c0_i32 = arith.constant 0 : i32
    %c0_i32_0 = arith.constant 0 : i32
    %c0_i32_1 = arith.constant 0 : i32
    return %c0_i32, %c0_i32_0 : i32, i32
  }
  func.func @transform_3(%arg0: i32) -> (i32, i32) {
    %c0_i32 = arith.constant 0 : i32
    %c0_i32_0 = arith.constant 0 : i32
    %c0_i32_1 = arith.constant 0 : i32
    return %c0_i32, %c0_i32_0 : i32, i32
  }
  func.func @transform_4(%arg0: i32) -> (i32, i32) {
    %c0_i32 = arith.constant 0 : i32
    %c0_i32_0 = arith.constant 0 : i32
    %c0_i32_1 = arith.constant 0 : i32
    return %c0_i32, %c0_i32_0 : i32, i32
  }
  func.func @transform_5(%arg0: i32) -> (i32, i32, i32) {
    %c0_i32 = arith.constant 0 : i32
    %c0_i32_0 = arith.constant 0 : i32
    %c0_i32_1 = arith.constant 0 : i32
    return %arg0, %c0_i32, %c0_i32_0 : i32, i32, i32
  }
}

</mosaic_0001>

<llo_original>
// kernel: tpu_custom_call.1
$region0: #{tpu_custom_call.1}
  #allocation0 [shape = 'u32[]', space=smem, size = 0x4, offset = 0x4, fixed_abs, tag = 'smem constant byte address 0x4 - core index']
  #allocation1 [shape = 'u32[144,128]{1,0:T(1,128)}', space=vmem, size = 0x12000, scoped, tag = 'internal scratch']
  %s0 = inlined_call_operand.hbm [shape: f32[2,16,256], index: 0, kind: input, shape index: {}]
  %s1 = inlined_call_operand.vmem [shape: f32[16,8], index: 1, kind: input, shape index: {}]
  %s2 = inlined_call_operand.vmem [shape: f32[1,8], index: 2, kind: input, shape index: {}]
  %s3 = inlined_call_operand.vmem [shape: f32[8,16], index: 3, kind: input, shape index: {}]
  %s4 = inlined_call_operand.vmem [shape: f32[1,16], index: 4, kind: input, shape index: {}]
  %s5 = inlined_call_operand.hbm [shape: f32[2,16,256], index: 5, kind: output, shape index: {}]
  %s6 = sld [smem:[#allocation0]]
  $region34: #{tpu_custom_call.1} parent=0
    _
  %s8 = ssub.s32 1, %s6
  %s9 = scalar_select 0, %s8, %s6
  $region1: #{tpu_custom_call.1} parent=0
    #allocation2 [shape = 'u8[32768]{0}', space=vmem, size = 0x8000, scoped, tag = 'input window, operand 0, single buffered']
    #allocation3 [shape = 's32[1]{0}', space=sflag, size = 0x4, scoped, tag = 'scoped memory for tpu_custom_call.1']
    #allocation4 [shape = 's32[1]{0}', space=sflag, size = 0x4, scoped, tag = 'scoped memory for tpu_custom_call.1']
    #allocation5 [shape = 'u8[32768]{0}', space=vmem, size = 0x8000, scoped, tag = 'output window, operand 0, single buffered']
    %10 = vsyncpa [#allocation3], 0
    %11 = vsyncpa [#allocation4], 0
    // Predicated region
    $region2: #{tpu_custom_call.1} parent=1 // pred_check
      _
    $region3: #{tpu_custom_call.1} parent=1 // pred_check_branch
      %13 = sbr.rel (0) target = $region5
    $region4: #{tpu_custom_call.1} parent=1 // pred_region
      %s15 = ssub.s32 1024, 1024
      %16 = vsyncadd [#allocation3], %s15
      %s17 = sshll.u32 [#allocation2], 4
      %s18 = int_to_ptr.vmem [resolvable:$true] %s17
      %23 = dma.hbm_to_vmem [thread:$0]  %s0, 1024, %s18, [#allocation3], 256, 256, 16
    $region5: #{tpu_custom_call.1} parent=1 // pred_fallthru
      _
    // Predicated region
    $region6: #{tpu_custom_call.1} parent=1 // pred_check
      _
    $region7: #{tpu_custom_call.1} parent=1 // pred_check_branch
      %25 = sbr.rel (0) target = $region9
    $region8: #{tpu_custom_call.1} parent=1 // pred_region
      _
    $region9: #{tpu_custom_call.1} parent=1 // pred_fallthru
      _
    // Predicated region
    $region10: #{tpu_custom_call.1} parent=1 // pred_check
      _
    $region11: #{tpu_custom_call.1} parent=1 // pred_check_branch
      %27 = sbr.rel (0) target = $region13
    $region12: #{tpu_custom_call.1} parent=1 // pred_region
      _
    $region13: #{tpu_custom_call.1} parent=1 // pred_fallthru
      _
    // Predicated region
    $region14: #{tpu_custom_call.1} parent=1 // pred_check
      _
    $region15: #{tpu_custom_call.1} parent=1 // pred_check_branch
      %29 = sbr.rel (0) target = $region17
    $region16: #{tpu_custom_call.1} parent=1 // pred_region
      _
    $region17: #{tpu_custom_call.1} parent=1 // pred_fallthru
      _
    // Predicated region
    $region18: #{tpu_custom_call.1} parent=1 // pred_check
      _
    $region19: #{tpu_custom_call.1} parent=1 // pred_check_branch
      %31 = sbr.rel (0) target = $region21
    $region20: #{tpu_custom_call.1} parent=1 // pred_region
      _
    $region21: #{tpu_custom_call.1} parent=1 // pred_fallthru
      _
    // Predicated region
    $region22: #{tpu_custom_call.1} parent=1 // pred_check
      _
    $region23: #{tpu_custom_call.1} parent=1 // pred_check_branch
      %33 = sbr.rel (0) target = $region25
    $region24: #{tpu_custom_call.1} parent=1 // pred_region
      %34 = dma.done [#allocation3], 1024
    $region25: #{tpu_custom_call.1} parent=1 // pred_fallthru
      _
    %v35 = vld [vmem:[#allocation2] sm:$0xff]
    %v36 = vld [vmem:[#allocation2 + $0x8] sm:$0xff]
    %v37 = vld [vmem:[#allocation2 + $0x10] sm:$0xff]
    %v38 = vld [vmem:[#allocation2 + $0x18] sm:$0xff]
    %v39 = vld [vmem:[#allocation2 + $0x20] sm:$0xff]
    %v40 = vld [vmem:[#allocation2 + $0x28] sm:$0xff]
    %v41 = vld [vmem:[#allocation2 + $0x30] sm:$0xff]
    %v42 = vld [vmem:[#allocation2 + $0x38] sm:$0xff]
    %v43 = vadd.f32 %v35, %v36
    %44 = vadd.xlane.f32.xlu0 %v43
    %v45 = vpop.xlane.xlu0 %44
    %v46 = vadd.f32 %v37, %v38
    %47 = vadd.xlane.f32.xlu0 %v46
    %v48 = vpop.xlane.xlu0 %47
    %v49 = vadd.f32 %v39, %v40
    %50 = vadd.xlane.f32.xlu0 %v49
    %v51 = vpop.xlane.xlu0 %50
    %v52 = vadd.f32 %v41, %v42
    %53 = vadd.xlane.f32.xlu0 %v52
    %v54 = vpop.xlane.xlu0 %53
    %v55 = vmul.f32 %v45, 0.00390625
    %v56 = vmul.f32 %v48, 0.00390625
    %v57 = vmul.f32 %v51, 0.00390625
    %v58 = vmul.f32 %v54, 0.00390625
    %v59 = vld [vmem:[%s1] sm:$0xff]
    %v60 = vld [vmem:[%s1 + $0x8] sm:$0xff]
    %v61 = vld [vmem:[%s2] sm:$0x1]
    %v63 = vlaneseq
    %v64 = vshrl.u32 %v63, 7
    %v65 = vsub.s32 0, %v64
    %v66 = vrot.slane %v61, %v65
    %v72 = vlaneseq
    %v73 = vand.u32 %v72, 127
    %v74 = vlaneseq
    %v75 = vshrl.u32 %v74, 7
    %v76 = vsub.s32 %v73, %v75
    %v77 = vrot.slane %v55, %v76
    %v78 = vadd.s32 %v73, 4294967288
    %v79 = vlaneseq
    %v80 = vshrl.u32 %v79, 7
    %v81 = vsub.s32 %v78, %v80
    %v82 = vrot.slane %v56, %v81
    %vm83 = vcmask 130112
    %v84 = vsel %vm83, %v82, %v77
    %v85 = vlaneseq
    %v86 = vshrl.u32 %v85, 7
    %v87 = vsub.s32 %v73, %v86
    %v88 = vrot.slane %v57, %v87
    %v89 = vlaneseq
    %v90 = vshrl.u32 %v89, 7
    %v91 = vsub.s32 %v78, %v90
    %v92 = vrot.slane %v58, %v91
    %v93 = vsel %vm83, %v92, %v88
    %vm94 = vcmask 1041409
    %v95 = vsel %vm94, %v93, %v84
    %vm96 = vcmask 130048
    %v97 = vsel %vm96, %v95, 0
    %99 = vmatprep.subr.mxu0 0.0
    %100 = vmatpush1.msra.mxu0 0.0
    %101 = vmatprep.subr.mxu0 0.0
    %102 = vmatpush1.msra.mxu0 0.0
    %103 = vmatprep.subr.mxu0 0.0
    %104 = vmatpush1.msra.mxu0 0.0
    %105 = vmatprep.subr.mxu0 0.0
    %106 = vmatpush1.msra.mxu0 0.0
    %107 = vmatprep.subr.mxu0 0.0
    %108 = vmatpush1.msra.mxu0 0.0
    %109 = vmatprep.subr.mxu0 0.0
    %110 = vmatpush1.msra.mxu0 0.0
    %111 = vmatprep.subr.mxu0 0.0
    %112 = vmatpush1.msra.mxu0 0.0
    %113 = vmatprep.subr.mxu0 0.0
    %114 = vmatpush1.msra.mxu0 0.0
    %115 = vmatprep.subr.mxu0 0.0
    %116 = vmatpush1.msra.mxu0 0.0
    %117 = vmatprep.subr.mxu0 0.0
    %118 = vmatpush1.msra.mxu0 0.0
    %119 = vmatprep.subr.mxu0 0.0
    %120 = vmatpush1.msra.mxu0 0.0
    %121 = vmatprep.subr.mxu0 0.0
    %122 = vmatpush1.msra.mxu0 0.0
    %123 = vmatprep.subr.mxu0 0.0
    %124 = vmatpush1.msra.mxu0 0.0
    %125 = vmatprep.subr.mxu0 0.0
    %126 = vmatpush1.msra.mxu0 0.0
    %127 = vmatprep.subr.mxu0 0.0
    %128 = vmatpush1.msra.mxu0 %v60
    %129 = vmatprep.subr.mxu0 0.0
    %130 = vmatpush1.msra.mxu0 %v59
    %131 = vmatprep.subr.mxu0 0.0
    %132 = vmatpush2.msra.mxu0 0.0
    %133 = vmatprep.subr.mxu0 0.0
    %134 = vmatpush2.msra.mxu0 0.0
    %135 = vmatprep.subr.mxu0 0.0
    %136 = vmatpush2.msra.mxu0 0.0
    %137 = vmatprep.subr.mxu0 0.0
    %138 = vmatpush2.msra.mxu0 0.0
    %139 = vmatprep.subr.mxu0 0.0
    %140 = vmatpush2.msra.mxu0 0.0
    %141 = vmatprep.subr.mxu0 0.0
    %142 = vmatpush2.msra.mxu0 0.0
    %143 = vmatprep.subr.mxu0 0.0
    %144 = vmatpush2.msra.mxu0 0.0
    %145 = vmatprep.subr.mxu0 0.0
    %146 = vmatpush2.msra.mxu0 0.0
    %147 = vmatprep.subr.mxu0 0.0
    %148 = vmatpush2.msra.mxu0 0.0
    %149 = vmatprep.subr.mxu0 0.0
    %150 = vmatpush2.msra.mxu0 0.0
    %151 = vmatprep.subr.mxu0 0.0
    %152 = vmatpush2.msra.mxu0 0.0
    %153 = vmatprep.subr.mxu0 0.0
    %154 = vmatpush2.msra.mxu0 0.0
    %155 = vmatprep.subr.mxu0 0.0
    %156 = vmatpush2.msra.mxu0 0.0
    %157 = vmatprep.subr.mxu0 0.0
    %158 = vmatpush2.msra.mxu0 0.0
    %159 = vmatprep.subr.mxu0 0.0
    %160 = vmatpush2.msra.mxu0 0.0
    %161 = vmatprep.subr.mxu0 0.0
    %162 = vmatpush2.msra.mxu0 0.0
    %163 = vmatprep.mubr.f32.mxu0 0.0
    %164 = vmatmul.mubr.f32.gmra.mxu0 %v97
    %v165 = vpop.f32.mrf.mxu0
    %v166 = vadd.f32 %v66, %v165
    %v167 = vpop.f32.mrf.mxu0
    %168 = vdwg.mxu0
    %v169 = vmax.f32 %v166, 0.0
    %v170 = vld [vmem:[%s3] sm:$0xff]
    %v171 = vld [vmem:[%s4] sm:$0x1]
    %v173 = vlaneseq
    %v174 = vshrl.u32 %v173, 7
    %v175 = vsub.s32 0, %v174
    %v176 = vrot.slane %v171, %v175
    %vm178 = vcmask 64512
    %v180 = vsel %vm178, %v169, 0
    %182 = vmatprep.subr.mxu0 0.0
    %183 = vmatpush1.msra.mxu0 0.0
    %184 = vmatprep.subr.mxu0 0.0
    %185 = vmatpush1.msra.mxu0 0.0
    %186 = vmatprep.subr.mxu0 0.0
    %187 = vmatpush1.msra.mxu0 0.0
    %188 = vmatprep.subr.mxu0 0.0
    %189 = vmatpush1.msra.mxu0 0.0
    %190 = vmatprep.subr.mxu0 0.0
    %191 = vmatpush1.msra.mxu0 0.0
    %192 = vmatprep.subr.mxu0 0.0
    %193 = vmatpush1.msra.mxu0 0.0
    %194 = vmatprep.subr.mxu0 0.0
    %195 = vmatpush1.msra.mxu0 0.0
    %196 = vmatprep.subr.mxu0 0.0
    %197 = vmatpush1.msra.mxu0 0.0
    %198 = vmatprep.subr.mxu0 0.0
    %199 = vmatpush1.msra.mxu0 0.0
    %200 = vmatprep.subr.mxu0 0.0
    %201 = vmatpush1.msra.mxu0 0.0
    %202 = vmatprep.subr.mxu0 0.0
    %203 = vmatpush1.msra.mxu0 0.0
    %204 = vmatprep.subr.mxu0 0.0
    %205 = vmatpush1.msra.mxu0 0.0
    %206 = vmatprep.subr.mxu0 0.0
    %207 = vmatpush1.msra.mxu0 0.0
    %208 = vmatprep.subr.mxu0 0.0
    %209 = vmatpush1.msra.mxu0 0.0
    %210 = vmatprep.subr.mxu0 0.0
    %211 = vmatpush1.msra.mxu0 0.0
    %212 = vmatprep.subr.mxu0 0.0
    %213 = vmatpush1.msra.mxu0 %v170
    %214 = vmatprep.subr.mxu0 0.0
    %215 = vmatpush2.msra.mxu0 0.0
    %216 = vmatprep.subr.mxu0 0.0
    %217 = vmatpush2.msra.mxu0 0.0
    %218 = vmatprep.subr.mxu0 0.0
    %219 = vmatpush2.msra.mxu0 0.0
    %220 = vmatprep.subr.mxu0 0.0
    %221 = vmatpush2.msra.mxu0 0.0
    %222 = vmatprep.subr.mxu0 0.0
    %223 = vmatpush2.msra.mxu0 0.0
    %224 = vmatprep.subr.mxu0 0.0
    %225 = vmatpush2.msra.mxu0 0.0
    %226 = vmatprep.subr.mxu0 0.0
    %227 = vmatpush2.msra.mxu0 0.0
    %228 = vmatprep.subr.mxu0 0.0
    %229 = vmatpush2.msra.mxu0 0.0
    %230 = vmatprep.subr.mxu0 0.0
    %231 = vmatpush2.msra.mxu0 0.0
    %232 = vmatprep.subr.mxu0 0.0
    %233 = vmatpush2.msra.mxu0 0.0
    %234 = vmatprep.subr.mxu0 0.0
    %235 = vmatpush2.msra.mxu0 0.0
    %236 = vmatprep.subr.mxu0 0.0
    %237 = vmatpush2.msra.mxu0 0.0
    %238 = vmatprep.subr.mxu0 0.0
    %239 = vmatpush2.msra.mxu0 0.0
    %240 = vmatprep.subr.mxu0 0.0
    %241 = vmatpush2.msra.mxu0 0.0
    %242 = vmatprep.subr.mxu0 0.0
    %243 = vmatpush2.msra.mxu0 0.0
    %244 = vmatprep.subr.mxu0 0.0
    %245 = vmatpush2.msra.mxu0 0.0
    %246 = vmatprep.mubr.f32.mxu0 0.0
    %247 = vmatmul.mubr.f32.gmra.mxu0 %v180
    %v248 = vpop.f32.mrf.mxu0
    %v249 = vadd.f32 %v176, %v248
    %v250 = vpop.f32.mrf.mxu0
    %251 = vdwg.mxu0
    %v252 = vadd.f32 %v249, 3.0
    %v253 = vmul.f32 %v252, 0.16666667
    %v254 = vmax.f32 %v253, 0.0
    %v255 = vmin.f32 %v254, 1.0
    %v256 = vlaneseq
    %v257 = vshrl.u32 %v256, 7
    %v258 = vsub.s32 0, %v257
    %v259 = vrot.slane %v255, %v258
    %261 = vbcast.lane.b32.xlu0 %v259, 256
    %v262 = vpop.permute.xlu0 %261
    %s264 = sor.u32 256, 8
    %265 = vbcast.lane.b32.xlu0 %v259, %s264
    %v266 = vpop.permute.xlu0 %265
    %v267 = vlaneseq
    %v268 = vshrl.u32 %v267, 7
    %v269 = vsub.s32 1, %v268
    %v270 = vrot.slane %v255, %v269
    %272 = vbcast.lane.b32.xlu0 %v270, 256
    %v273 = vpop.permute.xlu0 %272
    %s275 = sor.u32 256, 8
    %276 = vbcast.lane.b32.xlu0 %v270, %s275
    %v277 = vpop.permute.xlu0 %276
    %v278 = vmul.f32 %v35, %v262
    %v279 = vmul.f32 %v36, %v262
    %v280 = vmul.f32 %v37, %v266
    %v281 = vmul.f32 %v38, %v266
    %v282 = vmul.f32 %v39, %v273
    %v283 = vmul.f32 %v40, %v273
    %v284 = vmul.f32 %v41, %v277
    %v285 = vmul.f32 %v42, %v277
    %286 = vst [vmem:[#allocation5] sm:$0xff] %v278
    %287 = vst [vmem:[#allocation5 + $0x8] sm:$0xff] %v279
    %288 = vst [vmem:[#allocation5 + $0x10] sm:$0xff] %v280
    %289 = vst [vmem:[#allocation5 + $0x18] sm:$0xff] %v281
    %290 = vst [vmem:[#allocation5 + $0x20] sm:$0xff] %v282
    %291 = vst [vmem:[#allocation5 + $0x28] sm:$0xff] %v283
    %292 = vst [vmem:[#allocation5 + $0x30] sm:$0xff] %v284
    %293 = vst [vmem:[#allocation5 + $0x38] sm:$0xff] %v285
    // Predicated region
    $region26: #{tpu_custom_call.1} parent=1 // pred_check
      _
    $region27: #{tpu_custom_call.1} parent=1 // pred_check_branch
      %295 = sbr.rel (0) target = $region29
    $region28: #{tpu_custom_call.1} parent=1 // pred_region
      %s297 = ssub.s32 1024, 1024
      %298 = vsyncadd [#allocation4], %s297
      %s299 = sshll.u32 [#allocation5], 4
      %s300 = int_to_ptr.vmem [resolvable:$true] %s299
      %305 = dma.vmem_to_hbm [thread:$0]  %s300, 1024, %s5, [#allocation4], 256, 256, 16
    $region29: #{tpu_custom_call.1} parent=1 // pred_fallthru
      _
    // Predicated region
    $region30: #{tpu_custom_call.1} parent=1 // pred_check
      _
    $region31: #{tpu_custom_call.1} parent=1 // pred_check_branch
      %307 = sbr.rel (0) target = $region33
    $region32: #{tpu_custom_call.1} parent=1 // pred_region
      %308 = dma.done [#allocation4], 1024
    $region33: #{tpu_custom_call.1} parent=1 // pred_fallthru
      _
    %309 = vsyncpa [#allocation3], 1
    %310 = vsyncpa [#allocation4], 1

</llo_original>
